<compile_context>
chip_gen: v7x
topology: tpu7x:2x2x1
jax: 0.10.0
libtpu: 0.0.40
codegen_flags: <defaults>
</compile_context>

<pallas_src>
import jax
import jax.numpy as jnp
from jax.experimental import pallas as pl
from jax.experimental.pallas import tpu as pltpu


MAX_TILE_B = 1024   # batch-tile cap: multiple of 128, fills the MXU M dimension many times over
OUT_PAD = 128       # layer-5 weight padded to one full lane width for the matmul; only col 0 stored
LAYER_DIMS = (512, 256, 128, 64, 1)


def dna_net_kernel(x_ref,
                   w1_ref, b1_ref,
                   w2_ref, b2_ref,
                   w3_ref, b3_ref,
                   w4_ref, b4_ref,
                   w5_ref, b5_ref,
                   o_ref):
    """Fused 5-layer MLP on one (tile_b, input_dim) batch tile.

    Matmuls run bf16 on the MXU with f32 accumulation; bias add / ReLU stay f32 on the VPU.
    """
    # TODO(synk): dropout (p=0.5) is identity in eval mode; training-mode masking not implemented.
    h = x_ref[...].astype(jnp.bfloat16)

    h = jnp.dot(h, w1_ref[...], preferred_element_type=jnp.float32) + b1_ref[...]
    h = jnp.maximum(h, 0.0).astype(jnp.bfloat16)

    h = jnp.dot(h, w2_ref[...], preferred_element_type=jnp.float32) + b2_ref[...]
    h = jnp.maximum(h, 0.0).astype(jnp.bfloat16)

    h = jnp.dot(h, w3_ref[...], preferred_element_type=jnp.float32) + b3_ref[...]
    h = jnp.maximum(h, 0.0).astype(jnp.bfloat16)

    h = jnp.dot(h, w4_ref[...], preferred_element_type=jnp.float32) + b4_ref[...]
    h = jnp.maximum(h, 0.0).astype(jnp.bfloat16)

    # Layer 5: matmul against the 128-lane-padded weight (zeros beyond col 0), then store only
    # the real column so the HBM writeback is (tile_b, 1) rather than (tile_b, 128).
    out = jnp.dot(h, w5_ref[...], preferred_element_type=jnp.float32) + b5_ref[...]
    o_ref[...] = out[:, 0:1].astype(o_ref.dtype)


def _resident_spec(a):
    """Weight/bias spec: same block index every grid step -> fetched once, stays VMEM-resident."""
    zeros = (0,) * a.ndim
    return pl.BlockSpec(a.shape, lambda i: zeros)


def _choose_tile_b(b8, max_tile=MAX_TILE_B):
    """Pick a batch tile (multiple of 8) giving >=2 grid steps for mid/large batches (v7x: 2 TCs)."""
    if b8 <= 256:
        return b8
    half = (((b8 + 1) // 2) + 127) // 128 * 128   # ~half the batch, rounded up to 128
    return min(max_tile, half)


def dna_net_forward(x, params, max_tile_b=MAX_TILE_B):
    """x: (B, input_dim) f32. params: list of (W, b), W shaped (in, out) f32, b shaped (1, out) f32."""
    B, input_dim = x.shape

    # Only pad the batch up to a multiple of 8 (sublane); ragged last grid block handles the rest.
    B8 = ((B + 7) // 8) * 8
    if B8 != B:
        x = jnp.pad(x, ((0, B8 - B), (0, 0)))

    tile_b = _choose_tile_b(B8, max_tile_b)
    num_tiles = pl.cdiv(B8, tile_b)

    # bf16 weights for the MXU, f32 biases for the VPU; pad layer-5 to one full lane width (128).
    flat = []
    for i, (W, b) in enumerate(params):
        if i == len(params) - 1:
            W = jnp.pad(W, ((0, 0), (0, OUT_PAD - W.shape[1])))
            b = jnp.pad(b, ((0, 0), (0, OUT_PAD - b.shape[1])))
        flat.append(W.astype(jnp.bfloat16))
        flat.append(b.astype(jnp.float32))

    in_specs = [
        pl.BlockSpec((tile_b, input_dim), lambda i: (i, 0)),
    ] + [_resident_spec(a) for a in flat]

    out = pl.pallas_call(
        dna_net_kernel,
        out_shape=jax.ShapeDtypeStruct((B8, 1), jnp.float32),
        grid_spec=pl.GridSpec(
            grid=(num_tiles,),
            in_specs=in_specs,
            out_specs=pl.BlockSpec((tile_b, 1), lambda i: (i, 0)),
        ),
        compiler_params=pltpu.CompilerParams(
            dimension_semantics=("parallel",),   # shard batch tiles across v7x's 2 TensorCores
            vmem_limit_bytes=32 << 20,           # peak ~6-8 MiB at tile 1024; fits v7x's 64 MiB
        ),
    )(x, *flat)

    return out[:B]


def init_params(key, input_dim):
    """Deterministic PyTorch-style uniform(-1/sqrt(fan_in), 1/sqrt(fan_in)) init (f32 master copy)."""
    dims = [input_dim, *LAYER_DIMS]
    params = []
    for i in range(len(dims) - 1):
        fan_in, fan_out = dims[i], dims[i + 1]
        key, kw, kb = jax.random.split(key, 3)
        bound = 1.0 / (fan_in ** 0.5)
        W = jax.random.uniform(kw, (fan_in, fan_out), jnp.float32, -bound, bound)
        b = jax.random.uniform(kb, (1, fan_out), jnp.float32, -bound, bound)
        params.append((W, b))
    return params


def reference_forward(x, params, matmul_dtype=jnp.float32):
    """Pure-JAX reference. matmul_dtype=bf16 mimics the kernel's MXU math (f32 accumulation)."""
    h = x
    for i, (W, b) in enumerate(params):
        h = jnp.dot(h.astype(matmul_dtype), W.astype(matmul_dtype),
                    preferred_element_type=jnp.float32) + b
        if i < len(params) - 1:
            h = jnp.maximum(h, 0.0)
    return h


if __name__ == "__main__":
    key = jax.random.PRNGKey(0)
    input_dim = 32

    k_params, k_x1, k_x2 = jax.random.split(key, 3)
    params = init_params(k_params, input_dim)

    # Small single-tile case.
    x_small = jax.random.normal(k_x1, (8, input_dim), jnp.float32)
    out_small = jax.block_until_ready(dna_net_forward(x_small, params))
    ref_small = reference_forward(x_small, params, matmul_dtype=jnp.bfloat16)
    assert out_small.shape == (8, 1), out_small.shape
    assert jnp.allclose(out_small, ref_small, atol=1e-2, rtol=1e-2)

    # Multi-tile case with a ragged last block (B=300 -> pad to 304, two tiles of 256).
    x_big = jax.random.normal(k_x2, (300, input_dim), jnp.float32)
    out_big = jax.block_until_ready(dna_net_forward(x_big, params))
    ref_big = reference_forward(x_big, params, matmul_dtype=jnp.bfloat16)
    assert out_big.shape == (300, 1), out_big.shape
    assert jnp.allclose(out_big, ref_big, atol=1e-2, rtol=1e-2)

    print("KERNEL_OK")
</pallas_src>

<mosaic_0001>
module attributes {stable_mosaic.version = 11 : i64} {
  func.func @dna_net_kernel(%arg0: i32, %arg1: memref<8x32xf32, #tpu.memory_space<vmem>>, %arg2: memref<32x512xbf16, #tpu.memory_space<vmem>>, %arg3: memref<1x512xf32, #tpu.memory_space<vmem>>, %arg4: memref<512x256xbf16, #tpu.memory_space<vmem>>, %arg5: memref<1x256xf32, #tpu.memory_space<vmem>>, %arg6: memref<256x128xbf16, #tpu.memory_space<vmem>>, %arg7: memref<1x128xf32, #tpu.memory_space<vmem>>, %arg8: memref<128x64xbf16, #tpu.memory_space<vmem>>, %arg9: memref<1x64xf32, #tpu.memory_space<vmem>>, %arg10: memref<64x128xbf16, #tpu.memory_space<vmem>>, %arg11: memref<1x128xf32, #tpu.memory_space<vmem>>, %arg12: memref<8x1xf32, #tpu.memory_space<vmem>>) attributes {dimension_semantics = [#tpu.dimension_semantics<parallel>], iteration_bounds = array<i64: 1>, scalar_prefetch = 0 : i64, scratch_operands = 0 : i64, tpu.core_type = #tpu.core_type<tc>, window_params = [{transform_indices = @transform_0, window_bounds = array<i64: 8, 32>}, {pipeline_mode = #tpu.pipeline_mode<synchronous>, transform_indices = @transform_1, window_bounds = array<i64: 32, 512>}, {pipeline_mode = #tpu.pipeline_mode<synchronous>, transform_indices = @transform_2, window_bounds = array<i64: 1, 512>}, {pipeline_mode = #tpu.pipeline_mode<synchronous>, transform_indices = @transform_3, window_bounds = array<i64: 512, 256>}, {pipeline_mode = #tpu.pipeline_mode<synchronous>, transform_indices = @transform_4, window_bounds = array<i64: 1, 256>}, {pipeline_mode = #tpu.pipeline_mode<synchronous>, transform_indices = @transform_5, window_bounds = array<i64: 256, 128>}, {pipeline_mode = #tpu.pipeline_mode<synchronous>, transform_indices = @transform_6, window_bounds = array<i64: 1, 128>}, {pipeline_mode = #tpu.pipeline_mode<synchronous>, transform_indices = @transform_7, window_bounds = array<i64: 128, 64>}, {pipeline_mode = #tpu.pipeline_mode<synchronous>, transform_indices = @transform_8, window_bounds = array<i64: 1, 64>}, {pipeline_mode = #tpu.pipeline_mode<synchronous>, transform_indices = @transform_9, window_bounds = array<i64: 64, 128>}, {pipeline_mode = #tpu.pipeline_mode<synchronous>, transform_indices = @transform_10, window_bounds = array<i64: 1, 128>}, {transform_indices = @transform_11, window_bounds = array<i64: 8, 1>}]} {
    %c0 = arith.constant 0 : index
    %c0_0 = arith.constant 0 : index
    %0 = vector.load %arg1[%c0, %c0_0] : memref<8x32xf32, #tpu.memory_space<vmem>>, vector<8x32xf32>
    %1 = arith.truncf %0 : vector<8x32xf32> to vector<8x32xbf16>
    %c0_1 = arith.constant 0 : index
    %c0_2 = arith.constant 0 : index
    %2 = vector.load %arg2[%c0_1, %c0_2] : memref<32x512xbf16, #tpu.memory_space<vmem>>, vector<32x512xbf16>
    %cst = arith.constant dense<0.000000e+00> : vector<8x512xf32>
    %3 = tpu.matmul %1, %2, %cst {dimension_numbers = #tpu.dot_dimension_numbers<[1], [0], [0], [1], [0, 0, 1, 1], [], []>} : vector<8x32xbf16>, vector<32x512xbf16>, vector<8x512xf32> -> vector<8x512xf32>
    %c0_3 = arith.constant 0 : index
    %c0_4 = arith.constant 0 : index
    %4 = vector.load %arg3[%c0_3, %c0_4] : memref<1x512xf32, #tpu.memory_space<vmem>>, vector<1x512xf32>
    %5 = vector.broadcast %4 : vector<1x512xf32> to vector<8x512xf32>
    %6 = arith.addf %3, %5 : vector<8x512xf32>
    %cst_5 = arith.constant 0.000000e+00 : f32
    %7 = vector.broadcast %cst_5 : f32 to vector<8x512xf32>
    %8 = arith.maximumf %6, %7 : vector<8x512xf32>
    %9 = arith.truncf %8 : vector<8x512xf32> to vector<8x512xbf16>
    %c0_6 = arith.constant 0 : index
    %c0_7 = arith.constant 0 : index
    %10 = vector.load %arg4[%c0_6, %c0_7] : memref<512x256xbf16, #tpu.memory_space<vmem>>, vector<512x256xbf16>
    %cst_8 = arith.constant dense<0.000000e+00> : vector<8x256xf32>
    %11 = tpu.matmul %9, %10, %cst_8 {dimension_numbers = #tpu.dot_dimension_numbers<[1], [0], [0], [1], [0, 0, 1, 1], [], []>} : vector<8x512xbf16>, vector<512x256xbf16>, vector<8x256xf32> -> vector<8x256xf32>
    %c0_9 = arith.constant 0 : index
    %c0_10 = arith.constant 0 : index
    %12 = vector.load %arg5[%c0_9, %c0_10] : memref<1x256xf32, #tpu.memory_space<vmem>>, vector<1x256xf32>
    %13 = vector.broadcast %12 : vector<1x256xf32> to vector<8x256xf32>
    %14 = arith.addf %11, %13 : vector<8x256xf32>
    %cst_11 = arith.constant 0.000000e+00 : f32
    %15 = vector.broadcast %cst_11 : f32 to vector<8x256xf32>
    %16 = arith.maximumf %14, %15 : vector<8x256xf32>
    %17 = arith.truncf %16 : vector<8x256xf32> to vector<8x256xbf16>
    %c0_12 = arith.constant 0 : index
    %c0_13 = arith.constant 0 : index
    %18 = vector.load %arg6[%c0_12, %c0_13] : memref<256x128xbf16, #tpu.memory_space<vmem>>, vector<256x128xbf16>
    %cst_14 = arith.constant dense<0.000000e+00> : vector<8x128xf32>
    %19 = tpu.matmul %17, %18, %cst_14 {dimension_numbers = #tpu.dot_dimension_numbers<[1], [0], [0], [1], [0, 0, 1, 1], [], []>} : vector<8x256xbf16>, vector<256x128xbf16>, vector<8x128xf32> -> vector<8x128xf32>
    %c0_15 = arith.constant 0 : index
    %c0_16 = arith.constant 0 : index
    %20 = vector.load %arg7[%c0_15, %c0_16] : memref<1x128xf32, #tpu.memory_space<vmem>>, vector<1x128xf32>
    %21 = vector.broadcast %20 : vector<1x128xf32> to vector<8x128xf32>
    %22 = arith.addf %19, %21 : vector<8x128xf32>
    %cst_17 = arith.constant 0.000000e+00 : f32
    %23 = vector.broadcast %cst_17 : f32 to vector<8x128xf32>
    %24 = arith.maximumf %22, %23 : vector<8x128xf32>
    %25 = arith.truncf %24 : vector<8x128xf32> to vector<8x128xbf16>
    %c0_18 = arith.constant 0 : index
    %c0_19 = arith.constant 0 : index
    %26 = vector.load %arg8[%c0_18, %c0_19] : memref<128x64xbf16, #tpu.memory_space<vmem>>, vector<128x64xbf16>
    %cst_20 = arith.constant dense<0.000000e+00> : vector<8x64xf32>
    %27 = tpu.matmul %25, %26, %cst_20 {dimension_numbers = #tpu.dot_dimension_numbers<[1], [0], [0], [1], [0, 0, 1, 1], [], []>} : vector<8x128xbf16>, vector<128x64xbf16>, vector<8x64xf32> -> vector<8x64xf32>
    %c0_21 = arith.constant 0 : index
    %c0_22 = arith.constant 0 : index
    %28 = vector.load %arg9[%c0_21, %c0_22] : memref<1x64xf32, #tpu.memory_space<vmem>>, vector<1x64xf32>
    %29 = vector.broadcast %28 : vector<1x64xf32> to vector<8x64xf32>
    %30 = arith.addf %27, %29 : vector<8x64xf32>
    %cst_23 = arith.constant 0.000000e+00 : f32
    %31 = vector.broadcast %cst_23 : f32 to vector<8x64xf32>
    %32 = arith.maximumf %30, %31 : vector<8x64xf32>
    %33 = arith.truncf %32 : vector<8x64xf32> to vector<8x64xbf16>
    %c0_24 = arith.constant 0 : index
    %c0_25 = arith.constant 0 : index
    %34 = vector.load %arg10[%c0_24, %c0_25] : memref<64x128xbf16, #tpu.memory_space<vmem>>, vector<64x128xbf16>
    %cst_26 = arith.constant dense<0.000000e+00> : vector<8x128xf32>
    %35 = tpu.matmul %33, %34, %cst_26 {dimension_numbers = #tpu.dot_dimension_numbers<[1], [0], [0], [1], [0, 0, 1, 1], [], []>} : vector<8x64xbf16>, vector<64x128xbf16>, vector<8x128xf32> -> vector<8x128xf32>
    %c0_27 = arith.constant 0 : index
    %c0_28 = arith.constant 0 : index
    %36 = vector.load %arg11[%c0_27, %c0_28] : memref<1x128xf32, #tpu.memory_space<vmem>>, vector<1x128xf32>
    %37 = vector.broadcast %36 : vector<1x128xf32> to vector<8x128xf32>
    %38 = arith.addf %35, %37 : vector<8x128xf32>
    %39 = vector.extract_strided_slice %38 {offsets = [0, 0], sizes = [8, 1], strides = [1, 1]} : vector<8x128xf32> to vector<8x1xf32>
    %c0_29 = arith.constant 0 : index
    %c0_30 = arith.constant 0 : index
    %40 = vector.load %arg12[%c0_29, %c0_30] : memref<8x1xf32, #tpu.memory_space<vmem>>, vector<8x1xf32>
    tpu.vector_store %arg12[%c0_29, %c0_30], %39 {strides = array<i32>} : memref<8x1xf32, #tpu.memory_space<vmem>>, vector<8x1xf32>,
    return
  }
  func.func @transform_0(%arg0: i32) -> (i32, i32) {
    %c0_i32 = arith.constant 0 : i32
    %c0_i32_0 = arith.constant 0 : i32
    return %arg0, %c0_i32 : i32, i32
  }
  func.func @transform_1(%arg0: i32) -> (i32, i32) {
    %c0_i32 = arith.constant 0 : i32
    %c0_i32_0 = arith.constant 0 : i32
    %c0_i32_1 = arith.constant 0 : i32
    return %c0_i32, %c0_i32_0 : i32, i32
  }
  func.func @transform_2(%arg0: i32) -> (i32, i32) {
    %c0_i32 = arith.constant 0 : i32
    %c0_i32_0 = arith.constant 0 : i32
    %c0_i32_1 = arith.constant 0 : i32
    return %c0_i32, %c0_i32_0 : i32, i32
  }
  func.func @transform_3(%arg0: i32) -> (i32, i32) {
    %c0_i32 = arith.constant 0 : i32
    %c0_i32_0 = arith.constant 0 : i32
    %c0_i32_1 = arith.constant 0 : i32
    return %c0_i32, %c0_i32_0 : i32, i32
  }
  func.func @transform_4(%arg0: i32) -> (i32, i32) {
    %c0_i32 = arith.constant 0 : i32
    %c0_i32_0 = arith.constant 0 : i32
    %c0_i32_1 = arith.constant 0 : i32
    return %c0_i32, %c0_i32_0 : i32, i32
  }
  func.func @transform_5(%arg0: i32) -> (i32, i32) {
    %c0_i32 = arith.constant 0 : i32
    %c0_i32_0 = arith.constant 0 : i32
    %c0_i32_1 = arith.constant 0 : i32
    return %c0_i32, %c0_i32_0 : i32, i32
  }
  func.func @transform_6(%arg0: i32) -> (i32, i32) {
    %c0_i32 = arith.constant 0 : i32
    %c0_i32_0 = arith.constant 0 : i32
    %c0_i32_1 = arith.constant 0 : i32
    return %c0_i32, %c0_i32_0 : i32, i32
  }
  func.func @transform_7(%arg0: i32) -> (i32, i32) {
    %c0_i32 = arith.constant 0 : i32
    %c0_i32_0 = arith.constant 0 : i32
    %c0_i32_1 = arith.constant 0 : i32
    return %c0_i32, %c0_i32_0 : i32, i32
  }
  func.func @transform_8(%arg0: i32) -> (i32, i32) {
    %c0_i32 = arith.constant 0 : i32
    %c0_i32_0 = arith.constant 0 : i32
    %c0_i32_1 = arith.constant 0 : i32
    return %c0_i32, %c0_i32_0 : i32, i32
  }
  func.func @transform_9(%arg0: i32) -> (i32, i32) {
    %c0_i32 = arith.constant 0 : i32
    %c0_i32_0 = arith.constant 0 : i32
    %c0_i32_1 = arith.constant 0 : i32
    return %c0_i32, %c0_i32_0 : i32, i32
  }
  func.func @transform_10(%arg0: i32) -> (i32, i32) {
    %c0_i32 = arith.constant 0 : i32
    %c0_i32_0 = arith.constant 0 : i32
    %c0_i32_1 = arith.constant 0 : i32
    return %c0_i32, %c0_i32_0 : i32, i32
  }
  func.func @transform_11(%arg0: i32) -> (i32, i32) {
    %c0_i32 = arith.constant 0 : i32
    %c0_i32_0 = arith.constant 0 : i32
    return %arg0, %c0_i32 : i32, i32
  }
}

</mosaic_0001>

<llo_original>
// kernel: tpu_custom_call.1
$region0: #{tpu_custom_call.1}
  #allocation0 [shape = 'u32[]', space=smem, size = 0x4, offset = 0x4, fixed_abs, tag = 'smem constant byte address 0x4 - core index']
  #allocation1 [shape = 'u32[144,128]{1,0:T(1,128)}', space=vmem, size = 0x12000, scoped, tag = 'internal scratch']
  %s0 = inlined_call_operand.hbm [shape: f32[8,32], index: 0, kind: input, shape index: {}]
  %s1 = inlined_call_operand.vmem [shape: bf16[32,512], index: 1, kind: input, shape index: {}]
  %s2 = inlined_call_operand.vmem [shape: f32[1,512], index: 2, kind: input, shape index: {}]
  %s3 = inlined_call_operand.hbm [shape: bf16[512,256], index: 3, kind: input, shape index: {}]
  %s4 = inlined_call_operand.vmem [shape: f32[1,256], index: 4, kind: input, shape index: {}]
  %s5 = inlined_call_operand.hbm [shape: bf16[256,128], index: 5, kind: input, shape index: {}]
  %s6 = inlined_call_operand.vmem [shape: f32[1,128], index: 6, kind: input, shape index: {}]
  %s7 = inlined_call_operand.vmem [shape: bf16[128,64], index: 7, kind: input, shape index: {}]
  %s8 = inlined_call_operand.vmem [shape: f32[1,64], index: 8, kind: input, shape index: {}]
  %s9 = inlined_call_operand.vmem [shape: bf16[64,128], index: 9, kind: input, shape index: {}]
  %s10 = inlined_call_operand.vmem [shape: f32[1,128], index: 10, kind: input, shape index: {}]
  %s11 = inlined_call_operand.vmem [shape: f32[8,1], index: 11, kind: output, shape index: {}]
  %s12 = sld [smem:[#allocation0]]
  $region66: #{tpu_custom_call.1} parent=0
    _
  %s14 = ssub.s32 1, %s12
  %s15 = scalar_select 0, %s14, %s12
  $region1: #{tpu_custom_call.1} parent=0
    #allocation2 [shape = 'u8[4096]{0}', space=vmem, size = 0x1000, scoped, tag = 'input window, operand 0, single buffered']
    #allocation3 [shape = 's32[1]{0}', space=sflag, size = 0x4, scoped, tag = 'scoped memory for tpu_custom_call.1']
    #allocation4 [shape = 'u8[262144]{0}', space=vmem, size = 0x40000, scoped, tag = 'input window, operand 3, single buffered']
    #allocation5 [shape = 's32[1]{0}', space=sflag, size = 0x4, scoped, tag = 'scoped memory for tpu_custom_call.1']
    #allocation6 [shape = 'u8[65536]{0}', space=vmem, size = 0x10000, scoped, tag = 'input window, operand 5, single buffered']
    %16 = vsyncpa [#allocation3], 0
    %17 = vsyncpa [#allocation5], 0
    // Predicated region
    $region2: #{tpu_custom_call.1} parent=1 // pred_check
      _
    $region3: #{tpu_custom_call.1} parent=1 // pred_check_branch
      %19 = sbr.rel (0) target = $region5
    $region4: #{tpu_custom_call.1} parent=1 // pred_region
      %s21 = ssub.s32 128, 128
      %22 = vsyncadd [#allocation3], %s21
      %s24 = sshll.u32 [#allocation2], 4
      %s25 = int_to_ptr.vmem [resolvable:$true] %s24
      %27 = dma.hbm_to_vmem [thread:$0]  %s0, 128, %s25, [#allocation3]
    $region5: #{tpu_custom_call.1} parent=1 // pred_fallthru
      _
    // Predicated region
    $region6: #{tpu_custom_call.1} parent=1 // pred_check
      _
    $region7: #{tpu_custom_call.1} parent=1 // pred_check_branch
      %29 = sbr.rel (0) target = $region9
    $region8: #{tpu_custom_call.1} parent=1 // pred_region
      _
    $region9: #{tpu_custom_call.1} parent=1 // pred_fallthru
      _
    // Predicated region
    $region10: #{tpu_custom_call.1} parent=1 // pred_check
      _
    $region11: #{tpu_custom_call.1} parent=1 // pred_check_branch
      %31 = sbr.rel (0) target = $region13
    $region12: #{tpu_custom_call.1} parent=1 // pred_region
      _
    $region13: #{tpu_custom_call.1} parent=1 // pred_fallthru
      _
    // Predicated region
    $region14: #{tpu_custom_call.1} parent=1 // pred_check
      _
    $region15: #{tpu_custom_call.1} parent=1 // pred_check_branch
      %33 = sbr.rel (0) target = $region17
    $region16: #{tpu_custom_call.1} parent=1 // pred_region
      %s35 = ssub.s32 8192, 8192
      %36 = vsyncadd [#allocation5], %s35
      %s37 = sshll.u32 [#allocation4], 4
      %s38 = int_to_ptr.vmem [resolvable:$true] %s37
      %43 = dma.hbm_to_vmem [thread:$0]  %s3, 8192, %s38, [#allocation5], 128, 128, 8
    $region17: #{tpu_custom_call.1} parent=1 // pred_fallthru
      _
    // Predicated region
    $region18: #{tpu_custom_call.1} parent=1 // pred_check
      _
    $region19: #{tpu_custom_call.1} parent=1 // pred_check_branch
      %45 = sbr.rel (0) target = $region21
    $region20: #{tpu_custom_call.1} parent=1 // pred_region
      _
    $region21: #{tpu_custom_call.1} parent=1 // pred_fallthru
      _
    // Predicated region
    $region22: #{tpu_custom_call.1} parent=1 // pred_check
      _
    $region23: #{tpu_custom_call.1} parent=1 // pred_check_branch
      %47 = sbr.rel (0) target = $region25
    $region24: #{tpu_custom_call.1} parent=1 // pred_region
      %s49 = ssub.s32 2048, 2048
      %50 = vsyncadd [#allocation5], %s49
      %s51 = sshll.u32 [#allocation6], 4
      %s52 = int_to_ptr.vmem [resolvable:$true] %s51
      %57 = dma.hbm_to_vmem [thread:$0]  %s5, 2048, %s52, [#allocation5], 64, 64, 4
    $region25: #{tpu_custom_call.1} parent=1 // pred_fallthru
      _
    // Predicated region
    $region26: #{tpu_custom_call.1} parent=1 // pred_check
      _
    $region27: #{tpu_custom_call.1} parent=1 // pred_check_branch
      %59 = sbr.rel (0) target = $region29
    $region28: #{tpu_custom_call.1} parent=1 // pred_region
      _
    $region29: #{tpu_custom_call.1} parent=1 // pred_fallthru
      _
    // Predicated region
    $region30: #{tpu_custom_call.1} parent=1 // pred_check
      _
    $region31: #{tpu_custom_call.1} parent=1 // pred_check_branch
      %61 = sbr.rel (0) target = $region33
    $region32: #{tpu_custom_call.1} parent=1 // pred_region
      _
    $region33: #{tpu_custom_call.1} parent=1 // pred_fallthru
      _
    // Predicated region
    $region34: #{tpu_custom_call.1} parent=1 // pred_check
      _
    $region35: #{tpu_custom_call.1} parent=1 // pred_check_branch
      %63 = sbr.rel (0) target = $region37
    $region36: #{tpu_custom_call.1} parent=1 // pred_region
      _
    $region37: #{tpu_custom_call.1} parent=1 // pred_fallthru
      _
    // Predicated region
    $region38: #{tpu_custom_call.1} parent=1 // pred_check
      _
    $region39: #{tpu_custom_call.1} parent=1 // pred_check_branch
      %65 = sbr.rel (0) target = $region41
    $region40: #{tpu_custom_call.1} parent=1 // pred_region
      _
    $region41: #{tpu_custom_call.1} parent=1 // pred_fallthru
      _
    // Predicated region
    $region42: #{tpu_custom_call.1} parent=1 // pred_check
      _
    $region43: #{tpu_custom_call.1} parent=1 // pred_check_branch
      %67 = sbr.rel (0) target = $region45
    $region44: #{tpu_custom_call.1} parent=1 // pred_region
      _
    $region45: #{tpu_custom_call.1} parent=1 // pred_fallthru
      _
    // Predicated region
    $region46: #{tpu_custom_call.1} parent=1 // pred_check
      _
    $region47: #{tpu_custom_call.1} parent=1 // pred_check_branch
      %69 = sbr.rel (0) target = $region49
    $region48: #{tpu_custom_call.1} parent=1 // pred_region
      %70 = dma.done [#allocation3], 128
    $region49: #{tpu_custom_call.1} parent=1 // pred_fallthru
      _
    // Predicated region
    $region50: #{tpu_custom_call.1} parent=1 // pred_check
      _
    $region51: #{tpu_custom_call.1} parent=1 // pred_check_branch
      %72 = sbr.rel (0) target = $region53
    $region52: #{tpu_custom_call.1} parent=1 // pred_region
      %73 = dma.done [#allocation5], 8192
    $region53: #{tpu_custom_call.1} parent=1 // pred_fallthru
      _
    // Predicated region
    $region54: #{tpu_custom_call.1} parent=1 // pred_check
      _
    $region55: #{tpu_custom_call.1} parent=1 // pred_check_branch
      %75 = sbr.rel (0) target = $region57
    $region56: #{tpu_custom_call.1} parent=1 // pred_region
      %76 = dma.done [#allocation5], 2048
    $region57: #{tpu_custom_call.1} parent=1 // pred_fallthru
      _
    %v78 = vld [vmem:[#allocation2] sm:$0xff]
    %v79 = vpack.c.bf16 %v78, %v78
    %v80 = vld [vmem:[%s1] sm:$0xff]
    %v81 = vld [vmem:[%s1 + $0x8] sm:$0xff]
    %v82 = vld [vmem:[%s1 + $0x10] sm:$0xff]
    %v83 = vld [vmem:[%s1 + $0x18] sm:$0xff]
    %v84 = vld [vmem:[%s1 + $0x20] sm:$0xff]
    %v85 = vld [vmem:[%s1 + $0x28] sm:$0xff]
    %v86 = vld [vmem:[%s1 + $0x30] sm:$0xff]
    %v87 = vld [vmem:[%s1 + $0x38] sm:$0xff]
    %v88 = vld [vmem:[%s2] sm:$0xf]
    %v90 = vlaneseq
    %v91 = vshrl.u32 %v90, 7
    %v92 = vsub.s32 0, %v91
    %v93 = vrot.slane %v88, %v92
    %v94 = vlaneseq
    %v95 = vshrl.u32 %v94, 7
    %v96 = vsub.s32 1, %v95
    %v97 = vrot.slane %v88, %v96
    %v98 = vlaneseq
    %v99 = vshrl.u32 %v98, 7
    %v100 = vsub.s32 2, %v99
    %v101 = vrot.slane %v88, %v100
    %v102 = vlaneseq
    %v103 = vshrl.u32 %v102, 7
    %v104 = vsub.s32 3, %v103
    %v105 = vrot.slane %v88, %v104
    %v118 = vunpack.c.l.b16 %v80
    %v119 = vunpack.c.h.b16 %v80
    %v120 = vunpack.c.l.b16 %v81
    %v121 = vunpack.c.h.b16 %v81
    %v122 = vunpack.c.l.b16 %v82
    %v123 = vunpack.c.h.b16 %v82
    %v124 = vunpack.c.l.b16 %v83
    %v125 = vunpack.c.h.b16 %v83
    %v126 = vunpack.c.l.b16 %v84
    %v127 = vunpack.c.h.b16 %v84
    %v128 = vunpack.c.l.b16 %v85
    %v129 = vunpack.c.h.b16 %v85
    %v130 = vunpack.c.l.b16 %v86
    %v131 = vunpack.c.h.b16 %v86
    %v132 = vunpack.c.l.b16 %v87
    %v133 = vunpack.c.h.b16 %v87
    %v134 = vpack.c.b16 %v122, %v118
    %v135 = vpack.c.b16 %v123, %v119
    %v136 = vpack.c.b16 %v124, %v120
    %v137 = vpack.c.b16 %v125, %v121
    %v138 = vpack.c.b16 %v130, %v126
    %v139 = vpack.c.b16 %v131, %v127
    %v140 = vpack.c.b16 %v132, %v128
    %v141 = vpack.c.b16 %v133, %v129
    %vm150 = vcmask 261120
    %v152 = vsel %vm150, %v79, 0
    %154 = vmatprep.subr.bf16.mxu0 %v135
    %155 = vmatpush1.bf16.msra.mxu0 %v134
    %156 = vmatprep.subr.bf16.mxu0 %v139
    %157 = vmatpush1.bf16.msra.mxu0 %v138
    %158 = vmatprep.subr.bf16.mxu0 0
    %159 = vmatpush1.bf16.msra.mxu0 0
    %160 = vmatprep.subr.bf16.mxu0 0
    %161 = vmatpush1.bf16.msra.mxu0 0
    %162 = vmatprep.subr.bf16.mxu0 0
    %163 = vmatpush1.bf16.msra.mxu0 0
    %164 = vmatprep.subr.bf16.mxu0 0
    %165 = vmatpush1.bf16.msra.mxu0 0
    %166 = vmatprep.subr.bf16.mxu0 0
    %167 = vmatpush1.bf16.msra.mxu0 0
    %168 = vmatprep.subr.bf16.mxu0 0
    %169 = vmatpush1.bf16.msra.mxu0 0
    %170 = vmatprep.subr.bf16.mxu0 0
    %171 = vmatpush1.bf16.msra.mxu0 0
    %172 = vmatprep.subr.bf16.mxu0 0
    %173 = vmatpush1.bf16.msra.mxu0 0
    %174 = vmatprep.subr.bf16.mxu0 0
    %175 = vmatpush1.bf16.msra.mxu0 0
    %176 = vmatprep.subr.bf16.mxu0 0
    %177 = vmatpush1.bf16.msra.mxu0 0
    %178 = vmatprep.subr.bf16.mxu0 0
    %179 = vmatpush1.bf16.msra.mxu0 0
    %180 = vmatprep.subr.bf16.mxu0 0
    %181 = vmatpush1.bf16.msra.mxu0 0
    %182 = vmatprep.subr.bf16.mxu0 0
    %183 = vmatpush1.bf16.msra.mxu0 0
    %184 = vmatprep.subr.bf16.mxu0 0
    %185 = vmatpush1.bf16.msra.mxu0 0
    %186 = vmatprep.mubr.bf16.mxu0 0
    %187 = vmatmul.mubr.bf16.gmra.mrb[0].mxu0 %v152
    %v188 = vpop.f32.mrb[0].mxu0
    %v189 = vadd.f32 %v93, %v188
    %v190 = vpop.f32.mrb[0].mxu0
    %v191 = vadd.f32 %v97, %v190
    %v192 = vpop.f32.mrb[0].mxu0
    %v193 = vpop.f32.mrb[0].mxu0
    %194 = vdwg.mxu0
    %195 = vmatprep.subr.bf16.mxu0 %v137
    %196 = vmatpush1.bf16.msra.mxu0 %v136
    %197 = vmatprep.subr.bf16.mxu0 %v141
    %198 = vmatpush1.bf16.msra.mxu0 %v140
    %199 = vmatprep.subr.bf16.mxu0 0
    %200 = vmatpush1.bf16.msra.mxu0 0
    %201 = vmatprep.subr.bf16.mxu0 0
    %202 = vmatpush1.bf16.msra.mxu0 0
    %203 = vmatprep.subr.bf16.mxu0 0
    %204 = vmatpush1.bf16.msra.mxu0 0
    %205 = vmatprep.subr.bf16.mxu0 0
    %206 = vmatpush1.bf16.msra.mxu0 0
    %207 = vmatprep.subr.bf16.mxu0 0
    %208 = vmatpush1.bf16.msra.mxu0 0
    %209 = vmatprep.subr.bf16.mxu0 0
    %210 = vmatpush1.bf16.msra.mxu0 0
    %211 = vmatprep.subr.bf16.mxu0 0
    %212 = vmatpush1.bf16.msra.mxu0 0
    %213 = vmatprep.subr.bf16.mxu0 0
    %214 = vmatpush1.bf16.msra.mxu0 0
    %215 = vmatprep.subr.bf16.mxu0 0
    %216 = vmatpush1.bf16.msra.mxu0 0
    %217 = vmatprep.subr.bf16.mxu0 0
    %218 = vmatpush1.bf16.msra.mxu0 0
    %219 = vmatprep.subr.bf16.mxu0 0
    %220 = vmatpush1.bf16.msra.mxu0 0
    %221 = vmatprep.subr.bf16.mxu0 0
    %222 = vmatpush1.bf16.msra.mxu0 0
    %223 = vmatprep.subr.bf16.mxu0 0
    %224 = vmatpush1.bf16.msra.mxu0 0
    %225 = vmatprep.subr.bf16.mxu0 0
    %226 = vmatpush1.bf16.msra.mxu0 0
    %227 = vmatprep.mubr.bf16.mxu0 0
    %228 = vmatmul.mubr.bf16.gmra.mrb[0].mxu0 %v152
    %v229 = vpop.f32.mrb[0].mxu0
    %v230 = vadd.f32 %v101, %v229
    %v231 = vpop.f32.mrb[0].mxu0
    %v232 = vadd.f32 %v105, %v231
    %v233 = vpop.f32.mrb[0].mxu0
    %v234 = vpop.f32.mrb[0].mxu0
    %235 = vdwg.mxu0
    %v236 = vmax.f32 %v189, 0.0
    %v237 = vmax.f32 %v191, 0.0
    %v238 = vmax.f32 %v230, 0.0
    %v239 = vmax.f32 %v232, 0.0
    %v240 = vpack.c.bf16 %v236, %v236
    %v241 = vpack.c.bf16 %v237, %v237
    %v242 = vpack.c.bf16 %v238, %v238
    %v243 = vpack.c.bf16 %v239, %v239
    %v244 = vld [vmem:[#allocation4] sm:$0xff]
    %v245 = vld [vmem:[#allocation4 + $0x8] sm:$0xff]
    %v246 = vld [vmem:[#allocation4 + $0x10] sm:$0xff]
    %v247 = vld [vmem:[#allocation4 + $0x18] sm:$0xff]
    %v248 = vld [vmem:[#allocation4 + $0x20] sm:$0xff]
    %v249 = vld [vmem:[#allocation4 + $0x28] sm:$0xff]
    %v250 = vld [vmem:[#allocation4 + $0x30] sm:$0xff]
    %v251 = vld [vmem:[#allocation4 + $0x38] sm:$0xff]
    %v252 = vld [vmem:[#allocation4 + $0x40] sm:$0xff]
    %v253 = vld [vmem:[#allocation4 + $0x48] sm:$0xff]
    %v254 = vld [vmem:[#allocation4 + $0x50] sm:$0xff]
    %v255 = vld [vmem:[#allocation4 + $0x58] sm:$0xff]
    %v256 = vld [vmem:[#allocation4 + $0x60] sm:$0xff]
    %v257 = vld [vmem:[#allocation4 + $0x68] sm:$0xff]
    %v258 = vld [vmem:[#allocation4 + $0x70] sm:$0xff]
    %v259 = vld [vmem:[#allocation4 + $0x78] sm:$0xff]
    %v260 = vld [vmem:[#allocation4 + $0x80] sm:$0xff]
    %v261 = vld [vmem:[#allocation4 + $0x88] sm:$0xff]
    %v262 = vld [vmem:[#allocation4 + $0x90] sm:$0xff]
    %v263 = vld [vmem:[#allocation4 + $0x98] sm:$0xff]
    %v264 = vld [vmem:[#allocation4 + $0xa0] sm:$0xff]
    %v265 = vld [vmem:[#allocation4 + $0xa8] sm:$0xff]
    %v266 = vld [vmem:[#allocation4 + $0xb0] sm:$0xff]
    %v267 = vld [vmem:[#allocation4 + $0xb8] sm:$0xff]
    %v268 = vld [vmem:[#allocation4 + $0xc0] sm:$0xff]
    %v269 = vld [vmem:[#allocation4 + $0xc8] sm:$0xff]
    %v270 = vld [vmem:[#allocation4 + $0xd0] sm:$0xff]
    %v271 = vld [vmem:[#allocation4 + $0xd8] sm:$0xff]
    %v272 = vld [vmem:[#allocation4 + $0xe0] sm:$0xff]
    %v273 = vld [vmem:[#allocation4 + $0xe8] sm:$0xff]
    %v274 = vld [vmem:[#allocation4 + $0xf0] sm:$0xff]
    %v275 = vld [vmem:[#allocation4 + $0xf8] sm:$0xff]
    %v276 = vld [vmem:[#allocation4 + $0x100] sm:$0xff]
    %v277 = vld [vmem:[#allocation4 + $0x108] sm:$0xff]
    %v278 = vld [vmem:[#allocation4 + $0x110] sm:$0xff]
    %v279 = vld [vmem:[#allocation4 + $0x118] sm:$0xff]
    %v280 = vld [vmem:[#allocation4 + $0x120] sm:$0xff]
    %v281 = vld [vmem:[#allocation4 + $0x128] sm:$0xff]
    %v282 = vld [vmem:[#allocation4 + $0x130] sm:$0xff]
    %v283 = vld [vmem:[#allocation4 + $0x138] sm:$0xff]
    %v284 = vld [vmem:[#allocation4 + $0x140] sm:$0xff]
    %v285 = vld [vmem:[#allocation4 + $0x148] sm:$0xff]
    %v286 = vld [vmem:[#allocation4 + $0x150] sm:$0xff]
    %v287 = vld [vmem:[#allocation4 + $0x158] sm:$0xff]
    %v288 = vld [vmem:[#allocation4 + $0x160] sm:$0xff]
    %v289 = vld [vmem:[#allocation4 + $0x168] sm:$0xff]
    %v290 = vld [vmem:[#allocation4 + $0x170] sm:$0xff]
    %v291 = vld [vmem:[#allocation4 + $0x178] sm:$0xff]
    %v292 = vld [vmem:[#allocation4 + $0x180] sm:$0xff]
    %v293 = vld [vmem:[#allocation4 + $0x188] sm:$0xff]
    %v294 = vld [vmem:[#allocation4 + $0x190] sm:$0xff]
    %v295 = vld [vmem:[#allocation4 + $0x198] sm:$0xff]
    %v296 = vld [vmem:[#allocation4 + $0x1a0] sm:$0xff]
    %v297 = vld [vmem:[#allocation4 + $0x1a8] sm:$0xff]
    %v298 = vld [vmem:[#allocation4 + $0x1b0] sm:$0xff]
    %v299 = vld [vmem:[#allocation4 + $0x1b8] sm:$0xff]
    %v300 = vld [vmem:[#allocation4 + $0x1c0] sm:$0xff]
    %v301 = vld [vmem:[#allocation4 + $0x1c8] sm:$0xff]
    %v302 = vld [vmem:[#allocation4 + $0x1d0] sm:$0xff]
    %v303 = vld [vmem:[#allocation4 + $0x1d8] sm:$0xff]
    %v304 = vld [vmem:[#allocation4 + $0x1e0] sm:$0xff]
    %v305 = vld [vmem:[#allocation4 + $0x1e8] sm:$0xff]
    %v306 = vld [vmem:[#allocation4 + $0x1f0] sm:$0xff]
    %v307 = vld [vmem:[#allocation4 + $0x1f8] sm:$0xff]
    %v308 = vld [vmem:[%s4] sm:$0x3]
    %v310 = vlaneseq
    %v311 = vshrl.u32 %v310, 7
    %v312 = vsub.s32 0, %v311
    %v313 = vrot.slane %v308, %v312
    %v314 = vlaneseq
    %v315 = vshrl.u32 %v314, 7
    %v316 = vsub.s32 1, %v315
    %v317 = vrot.slane %v308, %v316
    %v384 = vunpack.c.l.b16 %v244
    %v385 = vunpack.c.h.b16 %v244
    %v386 = vunpack.c.l.b16 %v245
    %v387 = vunpack.c.h.b16 %v245
    %v388 = vunpack.c.l.b16 %v246
    %v389 = vunpack.c.h.b16 %v246
    %v390 = vunpack.c.l.b16 %v247
    %v391 = vunpack.c.h.b16 %v247
    %v392 = vunpack.c.l.b16 %v248
    %v393 = vunpack.c.h.b16 %v248
    %v394 = vunpack.c.l.b16 %v249
    %v395 = vunpack.c.h.b16 %v249
    %v396 = vunpack.c.l.b16 %v250
    %v397 = vunpack.c.h.b16 %v250
    %v398 = vunpack.c.l.b16 %v251
    %v399 = vunpack.c.h.b16 %v251
    %v400 = vunpack.c.l.b16 %v252
    %v401 = vunpack.c.h.b16 %v252
    %v402 = vunpack.c.l.b16 %v253
    %v403 = vunpack.c.h.b16 %v253
    %v404 = vunpack.c.l.b16 %v254
    %v405 = vunpack.c.h.b16 %v254
    %v406 = vunpack.c.l.b16 %v255
    %v407 = vunpack.c.h.b16 %v255
    %v408 = vunpack.c.l.b16 %v256
    %v409 = vunpack.c.h.b16 %v256
    %v410 = vunpack.c.l.b16 %v257
    %v411 = vunpack.c.h.b16 %v257
    %v412 = vunpack.c.l.b16 %v258
    %v413 = vunpack.c.h.b16 %v258
    %v414 = vunpack.c.l.b16 %v259
    %v415 = vunpack.c.h.b16 %v259
    %v416 = vunpack.c.l.b16 %v260
    %v417 = vunpack.c.h.b16 %v260
    %v418 = vunpack.c.l.b16 %v261
    %v419 = vunpack.c.h.b16 %v261
    %v420 = vunpack.c.l.b16 %v262
    %v421 = vunpack.c.h.b16 %v262
    %v422 = vunpack.c.l.b16 %v263
    %v423 = vunpack.c.h.b16 %v263
    %v424 = vunpack.c.l.b16 %v264
    %v425 = vunpack.c.h.b16 %v264
    %v426 = vunpack.c.l.b16 %v265
    %v427 = vunpack.c.h.b16 %v265
    %v428 = vunpack.c.l.b16 %v266
    %v429 = vunpack.c.h.b16 %v266
    %v430 = vunpack.c.l.b16 %v267
    %v431 = vunpack.c.h.b16 %v267
    %v432 = vunpack.c.l.b16 %v268
    %v433 = vunpack.c.h.b16 %v268
    %v434 = vunpack.c.l.b16 %v269
    %v435 = vunpack.c.h.b16 %v269
    %v436 = vunpack.c.l.b16 %v270
    %v437 = vunpack.c.h.b16 %v270
    %v438 = vunpack.c.l.b16 %v271
    %v439 = vunpack.c.h.b16 %v271
    %v440 = vunpack.c.l.b16 %v272
    %v441 = vunpack.c.h.b16 %v272
    %v442 = vunpack.c.l.b16 %v273
    %v443 = vunpack.c.h.b16 %v273
    %v444 = vunpack.c.l.b16 %v274
    %v445 = vunpack.c.h.b16 %v274
    %v446 = vunpack.c.l.b16 %v275
    %v447 = vunpack.c.h.b16 %v275
    %v448 = vunpack.c.l.b16 %v276
    %v449 = vunpack.c.h.b16 %v276
    %v450 = vunpack.c.l.b16 %v277
    %v451 = vunpack.c.h.b16 %v277
    %v452 = vunpack.c.l.b16 %v278
    %v453 = vunpack.c.h.b16 %v278
    %v454 = vunpack.c.l.b16 %v279
    %v455 = vunpack.c.h.b16 %v279
    %v456 = vunpack.c.l.b16 %v280
    %v457 = vunpack.c.h.b16 %v280
    %v458 = vunpack.c.l.b16 %v281
    %v459 = vunpack.c.h.b16 %v281
    %v460 = vunpack.c.l.b16 %v282
    %v461 = vunpack.c.h.b16 %v282
    %v462 = vunpack.c.l.b16 %v283
    %v463 = vunpack.c.h.b16 %v283
    %v464 = vunpack.c.l.b16 %v284
    %v465 = vunpack.c.h.b16 %v284
    %v466 = vunpack.c.l.b16 %v285
    %v467 = vunpack.c.h.b16 %v285
    %v468 = vunpack.c.l.b16 %v286
    %v469 = vunpack.c.h.b16 %v286
    %v470 = vunpack.c.l.b16 %v287
    %v471 = vunpack.c.h.b16 %v287
    %v472 = vunpack.c.l.b16 %v288
    %v473 = vunpack.c.h.b16 %v288
    %v474 = vunpack.c.l.b16 %v289
    %v475 = vunpack.c.h.b16 %v289
    %v476 = vunpack.c.l.b16 %v290
    %v477 = vunpack.c.h.b16 %v290
    %v478 = vunpack.c.l.b16 %v291
    %v479 = vunpack.c.h.b16 %v291
    %v480 = vunpack.c.l.b16 %v292
    %v481 = vunpack.c.h.b16 %v292
    %v482 = vunpack.c.l.b16 %v293
    %v483 = vunpack.c.h.b16 %v293
    %v484 = vunpack.c.l.b16 %v294
    %v485 = vunpack.c.h.b16 %v294
    %v486 = vunpack.c.l.b16 %v295
    %v487 = vunpack.c.h.b16 %v295
    %v488 = vunpack.c.l.b16 %v296
    %v489 = vunpack.c.h.b16 %v296
    %v490 = vunpack.c.l.b16 %v297
    %v491 = vunpack.c.h.b16 %v297
    %v492 = vunpack.c.l.b16 %v298
    %v493 = vunpack.c.h.b16 %v298
    %v494 = vunpack.c.l.b16 %v299
    %v495 = vunpack.c.h.b16 %v299
    %v496 = vunpack.c.l.b16 %v300
    %v497 = vunpack.c.h.b16 %v300
    %v498 = vunpack.c.l.b16 %v301
    %v499 = vunpack.c.h.b16 %v301
    %v500 = vunpack.c.l.b16 %v302
    %v501 = vunpack.c.h.b16 %v302
    %v502 = vunpack.c.l.b16 %v303
    %v503 = vunpack.c.h.b16 %v303
    %v504 = vunpack.c.l.b16 %v304
    %v505 = vunpack.c.h.b16 %v304
    %v506 = vunpack.c.l.b16 %v305
    %v507 = vunpack.c.h.b16 %v305
    %v508 = vunpack.c.l.b16 %v306
    %v509 = vunpack.c.h.b16 %v306
    %v510 = vunpack.c.l.b16 %v307
    %v511 = vunpack.c.h.b16 %v307
    %v512 = vpack.c.b16 %v386, %v384
    %v513 = vpack.c.b16 %v387, %v385
    %v514 = vpack.c.b16 %v390, %v388
    %v515 = vpack.c.b16 %v391, %v389
    %v516 = vpack.c.b16 %v394, %v392
    %v517 = vpack.c.b16 %v395, %v393
    %v518 = vpack.c.b16 %v398, %v396
    %v519 = vpack.c.b16 %v399, %v397
    %v520 = vpack.c.b16 %v402, %v400
    %v521 = vpack.c.b16 %v403, %v401
    %v522 = vpack.c.b16 %v406, %v404
    %v523 = vpack.c.b16 %v407, %v405
    %v524 = vpack.c.b16 %v410, %v408
    %v525 = vpack.c.b16 %v411, %v409
    %v526 = vpack.c.b16 %v414, %v412
    %v527 = vpack.c.b16 %v415, %v413
    %v528 = vpack.c.b16 %v418, %v416
    %v529 = vpack.c.b16 %v419, %v417
    %v530 = vpack.c.b16 %v422, %v420
    %v531 = vpack.c.b16 %v423, %v421
    %v532 = vpack.c.b16 %v426, %v424
    %v533 = vpack.c.b16 %v427, %v425
    %v534 = vpack.c.b16 %v430, %v428
    %v535 = vpack.c.b16 %v431, %v429
    %v536 = vpack.c.b16 %v434, %v432
    %v537 = vpack.c.b16 %v435, %v433
    %v538 = vpack.c.b16 %v438, %v436
    %v539 = vpack.c.b16 %v439, %v437
    %v540 = vpack.c.b16 %v442, %v440
    %v541 = vpack.c.b16 %v443, %v441
    %v542 = vpack.c.b16 %v446, %v444
    %v543 = vpack.c.b16 %v447, %v445
    %v544 = vpack.c.b16 %v450, %v448
    %v545 = vpack.c.b16 %v451, %v449
    %v546 = vpack.c.b16 %v454, %v452
    %v547 = vpack.c.b16 %v455, %v453
    %v548 = vpack.c.b16 %v458, %v456
    %v549 = vpack.c.b16 %v459, %v457
    %v550 = vpack.c.b16 %v462, %v460
    %v551 = vpack.c.b16 %v463, %v461
    %v552 = vpack.c.b16 %v466, %v464
    %v553 = vpack.c.b16 %v467, %v465
    %v554 = vpack.c.b16 %v470, %v468
    %v555 = vpack.c.b16 %v471, %v469
    %v556 = vpack.c.b16 %v474, %v472
    %v557 = vpack.c.b16 %v475, %v473
    %v558 = vpack.c.b16 %v478, %v476
    %v559 = vpack.c.b16 %v479, %v477
    %v560 = vpack.c.b16 %v482, %v480
    %v561 = vpack.c.b16 %v483, %v481
    %v562 = vpack.c.b16 %v486, %v484
    %v563 = vpack.c.b16 %v487, %v485
    %v564 = vpack.c.b16 %v490, %v488
    %v565 = vpack.c.b16 %v491, %v489
    %v566 = vpack.c.b16 %v494, %v492
    %v567 = vpack.c.b16 %v495, %v493
    %v568 = vpack.c.b16 %v498, %v496
    %v569 = vpack.c.b16 %v499, %v497
    %v570 = vpack.c.b16 %v502, %v500
    %v571 = vpack.c.b16 %v503, %v501
    %v572 = vpack.c.b16 %v506, %v504
    %v573 = vpack.c.b16 %v507, %v505
    %v574 = vpack.c.b16 %v510, %v508
    %v575 = vpack.c.b16 %v511, %v509
    %640 = vmatprep.subr.bf16.mxu0 %v513
    %641 = vmatpush1.bf16.msra.mxu0 %v512
    %642 = vmatprep.subr.bf16.mxu0 %v515
    %643 = vmatpush1.bf16.msra.mxu0 %v514
    %644 = vmatprep.subr.bf16.mxu0 %v517
    %645 = vmatpush1.bf16.msra.mxu0 %v516
    %646 = vmatprep.subr.bf16.mxu0 %v519
    %647 = vmatpush1.bf16.msra.mxu0 %v518
    %648 = vmatprep.subr.bf16.mxu0 %v521
    %649 = vmatpush1.bf16.msra.mxu0 %v520
    %650 = vmatprep.subr.bf16.mxu0 %v523
    %651 = vmatpush1.bf16.msra.mxu0 %v522
    %652 = vmatprep.subr.bf16.mxu0 %v525
    %653 = vmatpush1.bf16.msra.mxu0 %v524
    %654 = vmatprep.subr.bf16.mxu0 %v527
    %655 = vmatpush1.bf16.msra.mxu0 %v526
    %656 = vmatprep.subr.bf16.mxu0 %v529
    %657 = vmatpush1.bf16.msra.mxu0 %v528
    %658 = vmatprep.subr.bf16.mxu0 %v531
    %659 = vmatpush1.bf16.msra.mxu0 %v530
    %660 = vmatprep.subr.bf16.mxu0 %v533
    %661 = vmatpush1.bf16.msra.mxu0 %v532
    %662 = vmatprep.subr.bf16.mxu0 %v535
    %663 = vmatpush1.bf16.msra.mxu0 %v534
    %664 = vmatprep.subr.bf16.mxu0 %v537
    %665 = vmatpush1.bf16.msra.mxu0 %v536
    %666 = vmatprep.subr.bf16.mxu0 %v539
    %667 = vmatpush1.bf16.msra.mxu0 %v538
    %668 = vmatprep.subr.bf16.mxu0 %v541
    %669 = vmatpush1.bf16.msra.mxu0 %v540
    %670 = vmatprep.subr.bf16.mxu0 %v543
    %671 = vmatpush1.bf16.msra.mxu0 %v542
    %672 = vmatprep.mubr.bf16.mxu0 %v241
    %673 = vmatmul.mubr.bf16.gmra.mrb[0].mxu0 %v240
    %v674 = vpop.f32.mrb[0].mxu0
    %v675 = vadd.f32 %v313, %v674
    %v676 = vpop.f32.mrb[0].mxu0
    %v677 = vadd.f32 %v317, %v676
    %v678 = vpop.f32.mrb[0].mxu0
    %v679 = vpop.f32.mrb[0].mxu0
    %680 = vdwg.mxu0
    %681 = vmatprep.subr.bf16.mxu0 %v545
    %682 = vmatpush1.bf16.msra.mxu0 %v544
    %683 = vmatprep.subr.bf16.mxu0 %v547
    %684 = vmatpush1.bf16.msra.mxu0 %v546
    %685 = vmatprep.subr.bf16.mxu0 %v549
    %686 = vmatpush1.bf16.msra.mxu0 %v548
    %687 = vmatprep.subr.bf16.mxu0 %v551
    %688 = vmatpush1.bf16.msra.mxu0 %v550
    %689 = vmatprep.subr.bf16.mxu0 %v553
    %690 = vmatpush1.bf16.msra.mxu0 %v552
    %691 = vmatprep.subr.bf16.mxu0 %v555
    %692 = vmatpush1.bf16.msra.mxu0 %v554
    %693 = vmatprep.subr.bf16.mxu0 %v557
    %694 = vmatpush1.bf16.msra.mxu0 %v556
    %695 = vmatprep.subr.bf16.mxu0 %v559
    %696 = vmatpush1.bf16.msra.mxu0 %v558
    %697 = vmatprep.subr.bf16.mxu0 %v561
    %698 = vmatpush1.bf16.msra.mxu0 %v560
    %699 = vmatprep.subr.bf16.mxu0 %v563
    %700 = vmatpush1.bf16.msra.mxu0 %v562
    %701 = vmatprep.subr.bf16.mxu0 %v565
    %702 = vmatpush1.bf16.msra.mxu0 %v564
    %703 = vmatprep.subr.bf16.mxu0 %v567
    %704 = vmatpush1.bf16.msra.mxu0 %v566
    %705 = vmatprep.subr.bf16.mxu0 %v569
    %706 = vmatpush1.bf16.msra.mxu0 %v568
    %707 = vmatprep.subr.bf16.mxu0 %v571
    %708 = vmatpush1.bf16.msra.mxu0 %v570
    %709 = vmatprep.subr.bf16.mxu0 %v573
    %710 = vmatpush1.bf16.msra.mxu0 %v572
    %711 = vmatprep.subr.bf16.mxu0 %v575
    %712 = vmatpush1.bf16.msra.mxu0 %v574
    %713 = vmatprep.mubr.bf16.mxu0 %v243
    %714 = vmatmul.mubr.bf16.gmra.mrb[0].mxu0 %v242
    %v715 = vpop.f32.mrb[0].mxu0
    %v716 = vadd.f32 %v675, %v715
    %v717 = vpop.f32.mrb[0].mxu0
    %v718 = vadd.f32 %v677, %v717
    %v719 = vpop.f32.mrb[0].mxu0
    %v720 = vpop.f32.mrb[0].mxu0
    %721 = vdwg.mxu0
    %v722 = vmax.f32 %v716, 0.0
    %v723 = vmax.f32 %v718, 0.0
    %v724 = vpack.c.bf16 %v722, %v722
    %v725 = vpack.c.bf16 %v723, %v723
    %v726 = vld [vmem:[#allocation6] sm:$0xf]
    %v727 = vld [vmem:[#allocation6 + $0x4] sm:$0xf]
    %v728 = vld [vmem:[#allocation6 + $0x8] sm:$0xf]
    %v729 = vld [vmem:[#allocation6 + $0xc] sm:$0xf]
    %v730 = vld [vmem:[#allocation6 + $0x10] sm:$0xf]
    %v731 = vld [vmem:[#allocation6 + $0x14] sm:$0xf]
    %v732 = vld [vmem:[#allocation6 + $0x18] sm:$0xf]
    %v733 = vld [vmem:[#allocation6 + $0x1c] sm:$0xf]
    %v734 = vld [vmem:[#allocation6 + $0x20] sm:$0xf]
    %v735 = vld [vmem:[#allocation6 + $0x24] sm:$0xf]
    %v736 = vld [vmem:[#allocation6 + $0x28] sm:$0xf]
    %v737 = vld [vmem:[#allocation6 + $0x2c] sm:$0xf]
    %v738 = vld [vmem:[#allocation6 + $0x30] sm:$0xf]
    %v739 = vld [vmem:[#allocation6 + $0x34] sm:$0xf]
    %v740 = vld [vmem:[#allocation6 + $0x38] sm:$0xf]
    %v741 = vld [vmem:[#allocation6 + $0x3c] sm:$0xf]
    %v742 = vld [vmem:[#allocation6 + $0x40] sm:$0xf]
    %v743 = vld [vmem:[#allocation6 + $0x44] sm:$0xf]
    %v744 = vld [vmem:[#allocation6 + $0x48] sm:$0xf]
    %v745 = vld [vmem:[#allocation6 + $0x4c] sm:$0xf]
    %v746 = vld [vmem:[#allocation6 + $0x50] sm:$0xf]
    %v747 = vld [vmem:[#allocation6 + $0x54] sm:$0xf]
    %v748 = vld [vmem:[#allocation6 + $0x58] sm:$0xf]
    %v749 = vld [vmem:[#allocation6 + $0x5c] sm:$0xf]
    %v750 = vld [vmem:[#allocation6 + $0x60] sm:$0xf]
    %v751 = vld [vmem:[#allocation6 + $0x64] sm:$0xf]
    %v752 = vld [vmem:[#allocation6 + $0x68] sm:$0xf]
    %v753 = vld [vmem:[#allocation6 + $0x6c] sm:$0xf]
    %v754 = vld [vmem:[#allocation6 + $0x70] sm:$0xf]
    %v755 = vld [vmem:[#allocation6 + $0x74] sm:$0xf]
    %v756 = vld [vmem:[#allocation6 + $0x78] sm:$0xf]
    %v757 = vld [vmem:[#allocation6 + $0x7c] sm:$0xf]
    %v758 = vld [vmem:[%s6] sm:$0x1]
    %v760 = vlaneseq
    %v761 = vshrl.u32 %v760, 7
    %v762 = vsub.s32 0, %v761
    %v763 = vrot.slane %v758, %v762
    %v797 = vunpack.c.l.b16 %v726
    %v798 = vunpack.c.l.b16 %v727
    %v799 = vunpack.c.l.b16 %v728
    %v800 = vunpack.c.l.b16 %v729
    %v801 = vunpack.c.l.b16 %v730
    %v802 = vunpack.c.l.b16 %v731
    %v803 = vunpack.c.l.b16 %v732
    %v804 = vunpack.c.l.b16 %v733
    %v805 = vunpack.c.l.b16 %v734
    %v806 = vunpack.c.l.b16 %v735
    %v807 = vunpack.c.l.b16 %v736
    %v808 = vunpack.c.l.b16 %v737
    %v809 = vunpack.c.l.b16 %v738
    %v810 = vunpack.c.l.b16 %v739
    %v811 = vunpack.c.l.b16 %v740
    %v812 = vunpack.c.l.b16 %v741
    %v813 = vunpack.c.l.b16 %v742
    %v814 = vunpack.c.l.b16 %v743
    %v815 = vunpack.c.l.b16 %v744
    %v816 = vunpack.c.l.b16 %v745
    %v817 = vunpack.c.l.b16 %v746
    %v818 = vunpack.c.l.b16 %v747
    %v819 = vunpack.c.l.b16 %v748
    %v820 = vunpack.c.l.b16 %v749
    %v821 = vunpack.c.l.b16 %v750
    %v822 = vunpack.c.l.b16 %v751
    %v823 = vunpack.c.l.b16 %v752
    %v824 = vunpack.c.l.b16 %v753
    %v825 = vunpack.c.l.b16 %v754
    %v826 = vunpack.c.l.b16 %v755
    %v827 = vunpack.c.l.b16 %v756
    %v828 = vunpack.c.l.b16 %v757
    %v829 = vpack.c.b16 %v798, %v797
    %v830 = vpack.c.b16 %v800, %v799
    %v831 = vpack.c.b16 %v802, %v801
    %v832 = vpack.c.b16 %v804, %v803
    %v833 = vpack.c.b16 %v806, %v805
    %v834 = vpack.c.b16 %v808, %v807
    %v835 = vpack.c.b16 %v810, %v809
    %v836 = vpack.c.b16 %v812, %v811
    %v837 = vpack.c.b16 %v814, %v813
    %v838 = vpack.c.b16 %v816, %v815
    %v839 = vpack.c.b16 %v818, %v817
    %v840 = vpack.c.b16 %v820, %v819
    %v841 = vpack.c.b16 %v822, %v821
    %v842 = vpack.c.b16 %v824, %v823
    %v843 = vpack.c.b16 %v826, %v825
    %v844 = vpack.c.b16 %v828, %v827
    %861 = vmatprep.subr.bf16.mxu0 0
    %862 = vmatpush1.bf16.msra.mxu0 %v829
    %863 = vmatprep.subr.bf16.mxu0 0
    %864 = vmatpush1.bf16.msra.mxu0 %v830
    %865 = vmatprep.subr.bf16.mxu0 0
    %866 = vmatpush1.bf16.msra.mxu0 %v831
    %867 = vmatprep.subr.bf16.mxu0 0
    %868 = vmatpush1.bf16.msra.mxu0 %v832
    %869 = vmatprep.subr.bf16.mxu0 0
    %870 = vmatpush1.bf16.msra.mxu0 %v833
    %871 = vmatprep.subr.bf16.mxu0 0
    %872 = vmatpush1.bf16.msra.mxu0 %v834
    %873 = vmatprep.subr.bf16.mxu0 0
    %874 = vmatpush1.bf16.msra.mxu0 %v835
    %875 = vmatprep.subr.bf16.mxu0 0
    %876 = vmatpush1.bf16.msra.mxu0 %v836
    %877 = vmatprep.subr.bf16.mxu0 0
    %878 = vmatpush1.bf16.msra.mxu0 %v837
    %879 = vmatprep.subr.bf16.mxu0 0
    %880 = vmatpush1.bf16.msra.mxu0 %v838
    %881 = vmatprep.subr.bf16.mxu0 0
    %882 = vmatpush1.bf16.msra.mxu0 %v839
    %883 = vmatprep.subr.bf16.mxu0 0
    %884 = vmatpush1.bf16.msra.mxu0 %v840
    %885 = vmatprep.subr.bf16.mxu0 0
    %886 = vmatpush1.bf16.msra.mxu0 %v841
    %887 = vmatprep.subr.bf16.mxu0 0
    %888 = vmatpush1.bf16.msra.mxu0 %v842
    %889 = vmatprep.subr.bf16.mxu0 0
    %890 = vmatpush1.bf16.msra.mxu0 %v843
    %891 = vmatprep.subr.bf16.mxu0 0
    %892 = vmatpush1.bf16.msra.mxu0 %v844
    %893 = vmatprep.mubr.bf16.mxu0 %v725
    %894 = vmatmul.mubr.bf16.gmra.mrb[0].mxu0 %v724
    %v895 = vpop.f32.mrb[0].mxu0
    %v896 = vadd.f32 %v763, %v895
    %v897 = vpop.f32.mrb[0].mxu0
    %v898 = vpop.f32.mrb[0].mxu0
    %v899 = vpop.f32.mrb[0].mxu0
    %900 = vdwg.mxu0
    %v901 = vmax.f32 %v896, 0.0
    %v902 = vpack.c.bf16 %v901, %v901
    %v903 = vld [vmem:[%s7] sm:$0xf]
    %v904 = vld [vmem:[%s7 + $0x4] sm:$0xf]
    %v905 = vld [vmem:[%s7 + $0x8] sm:$0xf]
    %v906 = vld [vmem:[%s7 + $0xc] sm:$0xf]
    %v907 = vld [vmem:[%s7 + $0x10] sm:$0xf]
    %v908 = vld [vmem:[%s7 + $0x14] sm:$0xf]
    %v909 = vld [vmem:[%s7 + $0x18] sm:$0xf]
    %v910 = vld [vmem:[%s7 + $0x1c] sm:$0xf]
    %v911 = vld [vmem:[%s7 + $0x20] sm:$0xf]
    %v912 = vld [vmem:[%s7 + $0x24] sm:$0xf]
    %v913 = vld [vmem:[%s7 + $0x28] sm:$0xf]
    %v914 = vld [vmem:[%s7 + $0x2c] sm:$0xf]
    %v915 = vld [vmem:[%s7 + $0x30] sm:$0xf]
    %v916 = vld [vmem:[%s7 + $0x34] sm:$0xf]
    %v917 = vld [vmem:[%s7 + $0x38] sm:$0xf]
    %v918 = vld [vmem:[%s7 + $0x3c] sm:$0xf]
    %v919 = vld [vmem:[%s8] sm:$0x1]
    %v921 = vlaneseq
    %v922 = vshrl.u32 %v921, 7
    %v923 = vsub.s32 0, %v922
    %v924 = vrot.slane %v919, %v923
    %v942 = vunpack.c.l.b16 %v903
    %v943 = vunpack.c.l.b16 %v904
    %v944 = vunpack.c.l.b16 %v905
    %v945 = vunpack.c.l.b16 %v906
    %v946 = vunpack.c.l.b16 %v907
    %v947 = vunpack.c.l.b16 %v908
    %v948 = vunpack.c.l.b16 %v909
    %v949 = vunpack.c.l.b16 %v910
    %v950 = vunpack.c.l.b16 %v911
    %v951 = vunpack.c.l.b16 %v912
    %v952 = vunpack.c.l.b16 %v913
    %v953 = vunpack.c.l.b16 %v914
    %v954 = vunpack.c.l.b16 %v915
    %v955 = vunpack.c.l.b16 %v916
    %v956 = vunpack.c.l.b16 %v917
    %v957 = vunpack.c.l.b16 %v918
    %v958 = vpack.c.b16 %v943, %v942
    %v959 = vpack.c.b16 %v945, %v944
    %v960 = vpack.c.b16 %v947, %v946
    %v961 = vpack.c.b16 %v949, %v948
    %v962 = vpack.c.b16 %v951, %v950
    %v963 = vpack.c.b16 %v953, %v952
    %v964 = vpack.c.b16 %v955, %v954
    %v965 = vpack.c.b16 %v957, %v956
    %974 = vmatprep.subr.bf16.mxu0 0
    %975 = vmatpush1.bf16.msra.mxu0 %v958
    %976 = vmatprep.subr.bf16.mxu0 0
    %977 = vmatpush1.bf16.msra.mxu0 %v959
    %978 = vmatprep.subr.bf16.mxu0 0
    %979 = vmatpush1.bf16.msra.mxu0 %v960
    %980 = vmatprep.subr.bf16.mxu0 0
    %981 = vmatpush1.bf16.msra.mxu0 %v961
    %982 = vmatprep.subr.bf16.mxu0 0
    %983 = vmatpush1.bf16.msra.mxu0 %v962
    %984 = vmatprep.subr.bf16.mxu0 0
    %985 = vmatpush1.bf16.msra.mxu0 %v963
    %986 = vmatprep.subr.bf16.mxu0 0
    %987 = vmatpush1.bf16.msra.mxu0 %v964
    %988 = vmatprep.subr.bf16.mxu0 0
    %989 = vmatpush1.bf16.msra.mxu0 %v965
    %990 = vmatprep.subr.bf16.mxu0 0
    %991 = vmatpush1.bf16.msra.mxu0 0
    %992 = vmatprep.subr.bf16.mxu0 0
    %993 = vmatpush1.bf16.msra.mxu0 0
    %994 = vmatprep.subr.bf16.mxu0 0
    %995 = vmatpush1.bf16.msra.mxu0 0
    %996 = vmatprep.subr.bf16.mxu0 0
    %997 = vmatpush1.bf16.msra.mxu0 0
    %998 = vmatprep.subr.bf16.mxu0 0
    %999 = vmatpush1.bf16.msra.mxu0 0
    %1000 = vmatprep.subr.bf16.mxu0 0
    %1001 = vmatpush1.bf16.msra.mxu0 0
    %1002 = vmatprep.subr.bf16.mxu0 0
    %1003 = vmatpush1.bf16.msra.mxu0 0
    %1004 = vmatprep.subr.bf16.mxu0 0
    %1005 = vmatpush1.bf16.msra.mxu0 0
    %1006 = vmatprep.mubr.bf16.mxu0 0
    %1007 = vmatmul.mubr.bf16.gmra.mrb[0].mxu0 %v902
    %v1008 = vpop.f32.mrb[0].mxu0
    %v1009 = vadd.f32 %v924, %v1008
    %v1010 = vpop.f32.mrb[0].mxu0
    %v1011 = vpop.f32.mrb[0].mxu0
    %v1012 = vpop.f32.mrb[0].mxu0
    %1013 = vdwg.mxu0
    %v1014 = vmax.f32 %v1009, 0.0
    %v1015 = vpack.c.bf16 %v1014, %v1014
    %v1016 = vld [vmem:[%s9] sm:$0xf]
    %v1017 = vld [vmem:[%s9 + $0x4] sm:$0xf]
    %v1018 = vld [vmem:[%s9 + $0x8] sm:$0xf]
    %v1019 = vld [vmem:[%s9 + $0xc] sm:$0xf]
    %v1020 = vld [vmem:[%s9 + $0x10] sm:$0xf]
    %v1021 = vld [vmem:[%s9 + $0x14] sm:$0xf]
    %v1022 = vld [vmem:[%s9 + $0x18] sm:$0xf]
    %v1023 = vld [vmem:[%s9 + $0x1c] sm:$0xf]
    %v1024 = vld [vmem:[%s10] sm:$0x1]
    %v1026 = vlaneseq
    %v1027 = vshrl.u32 %v1026, 7
    %v1028 = vsub.s32 0, %v1027
    %v1029 = vrot.slane %v1024, %v1028
    %v1039 = vunpack.c.l.b16 %v1016
    %v1040 = vunpack.c.l.b16 %v1017
    %v1041 = vunpack.c.l.b16 %v1018
    %v1042 = vunpack.c.l.b16 %v1019
    %v1043 = vunpack.c.l.b16 %v1020
    %v1044 = vunpack.c.l.b16 %v1021
    %v1045 = vunpack.c.l.b16 %v1022
    %v1046 = vunpack.c.l.b16 %v1023
    %v1047 = vpack.c.b16 %v1040, %v1039
    %v1048 = vpack.c.b16 %v1042, %v1041
    %v1049 = vpack.c.b16 %v1044, %v1043
    %v1050 = vpack.c.b16 %v1046, %v1045
    %vm1055 = vcmask 523264
    %v1057 = vsel %vm1055, %v1015, 0
    %1059 = vmatprep.subr.bf16.mxu0 0
    %1060 = vmatpush1.bf16.msra.mxu0 %v1047
    %1061 = vmatprep.subr.bf16.mxu0 0
    %1062 = vmatpush1.bf16.msra.mxu0 %v1048
    %1063 = vmatprep.subr.bf16.mxu0 0
    %1064 = vmatpush1.bf16.msra.mxu0 %v1049
    %1065 = vmatprep.subr.bf16.mxu0 0
    %1066 = vmatpush1.bf16.msra.mxu0 %v1050
    %1067 = vmatprep.subr.bf16.mxu0 0
    %1068 = vmatpush1.bf16.msra.mxu0 0
    %1069 = vmatprep.subr.bf16.mxu0 0
    %1070 = vmatpush1.bf16.msra.mxu0 0
    %1071 = vmatprep.subr.bf16.mxu0 0
    %1072 = vmatpush1.bf16.msra.mxu0 0
    %1073 = vmatprep.subr.bf16.mxu0 0
    %1074 = vmatpush1.bf16.msra.mxu0 0
    %1075 = vmatprep.subr.bf16.mxu0 0
    %1076 = vmatpush1.bf16.msra.mxu0 0
    %1077 = vmatprep.subr.bf16.mxu0 0
    %1078 = vmatpush1.bf16.msra.mxu0 0
    %1079 = vmatprep.subr.bf16.mxu0 0
    %1080 = vmatpush1.bf16.msra.mxu0 0
    %1081 = vmatprep.subr.bf16.mxu0 0
    %1082 = vmatpush1.bf16.msra.mxu0 0
    %1083 = vmatprep.subr.bf16.mxu0 0
    %1084 = vmatpush1.bf16.msra.mxu0 0
    %1085 = vmatprep.subr.bf16.mxu0 0
    %1086 = vmatpush1.bf16.msra.mxu0 0
    %1087 = vmatprep.subr.bf16.mxu0 0
    %1088 = vmatpush1.bf16.msra.mxu0 0
    %1089 = vmatprep.subr.bf16.mxu0 0
    %1090 = vmatpush1.bf16.msra.mxu0 0
    %1091 = vmatprep.mubr.bf16.mxu0 0
    %1092 = vmatmul.mubr.bf16.gmra.mrb[0].mxu0 %v1057
    %v1093 = vpop.f32.mrb[0].mxu0
    %v1094 = vadd.f32 %v1029, %v1093
    %v1095 = vpop.f32.mrb[0].mxu0
    %v1096 = vpop.f32.mrb[0].mxu0
    %v1097 = vpop.f32.mrb[0].mxu0
    %1098 = vdwg.mxu0
    %vm1099 = vcmask 7168
    %1100 = vst.msk [vmem:[%s11] sm:$0xff] %vm1099, %v1094
    // Predicated region
    $region58: #{tpu_custom_call.1} parent=1 // pred_check
      _
    $region59: #{tpu_custom_call.1} parent=1 // pred_check_branch
      %1102 = sbr.rel (0) target = $region61
    $region60: #{tpu_custom_call.1} parent=1 // pred_region
      _
    $region61: #{tpu_custom_call.1} parent=1 // pred_fallthru
      _
    // Predicated region
    $region62: #{tpu_custom_call.1} parent=1 // pred_check
      _
    $region63: #{tpu_custom_call.1} parent=1 // pred_check_branch
      %1104 = sbr.rel (0) target = $region65
    $region64: #{tpu_custom_call.1} parent=1 // pred_region
      _
    $region65: #{tpu_custom_call.1} parent=1 // pred_fallthru
      _
    %1105 = vsyncpa [#allocation3], 1
    %1106 = vsyncpa [#allocation5], 1

</llo_original>
